<compile_context>
chip_gen: v5e
topology: v5e:2x2
jax: 0.10.0
libtpu: 0.0.40
codegen_flags: <defaults>
</compile_context>

<pallas_src>
import functools

import jax
import jax.numpy as jnp
from jax.experimental import pallas as pl
from jax.experimental.pallas import tpu as pltpu

# ---------------------------------------------------------------------------
# Packed parameter layout.
# ---------------------------------------------------------------------------
FEAT = 64          # padded feature width used by every layer
IN_DIM = 24
OUT_DIM = 4

# weight slab rows: W1 [0,24), W2 [24,88), W3 [88,152), Wmu [152,216)
W_ROWS = ((0, 24), (24, 88), (88, 152), (152, 216))
W_SLAB_ROWS = 216
# vector slab rows: b1,b2,b3,bmu, g1,g2,g3, be1,be2,be3 (rows 10..15 zero pad)
ROW_B = (0, 1, 2, 3)
ROW_G = (4, 5, 6)
ROW_BE = (7, 8, 9)
V_SLAB_ROWS = 16


# ---------------------------------------------------------------------------
# Pallas kernel.  grid = (4 phases, num batch tiles).
#   phase 0: z1 = x@W1+b1              ; accumulate BN1 stats
#   phase 1: h1 = relu(BN1(z1)); z2=...; accumulate BN2 stats
#   phase 2: h2 = relu(BN2(z2)); z3=...; accumulate BN3 stats
#   phase 3: h3 = relu(BN3(z3)); mu = tanh(h3@Wmu+bmu) -> out
# ---------------------------------------------------------------------------
def munet4_kernel(x_ref, w_ref, v_ref, out_ref, zbuf, sums, affine, *, batch):
    p = pl.program_id(0)          # phase 0..3
    i = pl.program_id(1)          # batch tile
    tb = x_ref.shape[0]

    eps = jnp.float32(1e-5)
    inv_b = jnp.float32(1.0 / batch)

    # validity mask for zero-padded batch rows (keeps BN statistics exact)
    rows = i * tb + jax.lax.broadcasted_iota(jnp.int32, (tb, 1), 0)
    mask = (rows < batch).astype(jnp.float32)

    def linear(h, layer):
        r0, r1 = W_ROWS[layer]
        b = v_ref[ROW_B[layer]:ROW_B[layer] + 1, :]
        return jnp.dot(h, w_ref[r0:r1, :], preferred_element_type=jnp.float32) + b

    def accumulate(z):
        zm = z * mask
        s = jnp.sum(zm, axis=0, keepdims=True)
        ss = jnp.sum(zm * z, axis=0, keepdims=True)
        sums[...] = sums[...] + jnp.concatenate([s, ss], axis=0)

    def finalize_affine(layer):   # layer = 1..3 (static Python int)
        g = v_ref[ROW_G[layer - 1]:ROW_G[layer - 1] + 1, :]
        be = v_ref[ROW_BE[layer - 1]:ROW_BE[layer - 1] + 1, :]
        mean = sums[0:1, :] * inv_b
        var = jnp.maximum(sums[1:2, :] * inv_b - mean * mean, 0.0)   # clamp >= 0
        scale = g * jax.lax.rsqrt(var + eps)
        shift = be - mean * scale
        affine[...] = jnp.concatenate([scale, shift], axis=0)

    def bn_relu(z):
        return jnp.maximum(z * affine[0:1, :] + affine[1:2, :], 0.0)

    # ---- phase 0 -----------------------------------------------------------
    @pl.when(p == 0)
    def _():
        @pl.when(i == 0)
        def _():
            sums[...] = jnp.zeros_like(sums)
        z = linear(x_ref[...], 0)
        zbuf[i] = z
        accumulate(z)

    # ---- phases 1, 2 ---------------------------------------------------------
    for layer in (1, 2):
        @pl.when(p == layer)
        def _(layer=layer):
            @pl.when(i == 0)
            def _():
                finalize_affine(layer)          # read completed full-batch sums
                sums[...] = jnp.zeros_like(sums)  # then reset for this layer
            h = bn_relu(zbuf[i])
            z = linear(h, layer)
            zbuf[i] = z
            accumulate(z)

    # ---- phase 3 -------------------------------------------------------------
    @pl.when(p == 3)
    def _():
        @pl.when(i == 0)
        def _():
            finalize_affine(3)
        h = bn_relu(zbuf[i])
        mu = jnp.tanh(linear(h, 3))
        out_ref[...] = mu[:, 0:OUT_DIM].astype(out_ref.dtype)


# ---------------------------------------------------------------------------
# Wrapper.
# ---------------------------------------------------------------------------
def _round_up(n, m):
    return ((n + m - 1) // m) * m


@functools.partial(jax.jit, static_argnames=("block_rows",))
def munet4_forward(x, w_slab, v_slab, *, block_rows=None):
    batch, in_dim = x.shape
    assert in_dim == IN_DIM
    if block_rows is None:
        tb = 512 if batch >= 512 else _round_up(batch, 8)
    else:
        tb = _round_up(min(block_rows, max(batch, 8)), 8)
    nt = pl.cdiv(batch, tb)
    bp = nt * tb
    if bp != batch:
        x = jnp.pad(x, ((0, bp - batch), (0, 0)))

    # VMEM budget: full-batch z buffer + double-buffered x/out tiles + slabs.
    # TODO(synk): for batches whose [Bp,64] z-buffer no longer fits VMEM
    # (roughly > 50k rows), stage z in HBM across two pallas_calls per layer.
    vmem_bytes = int(bp * 128 * 4 + 4 * tb * 128 * 4 + 232 * 128 * 4 * 2 + (4 << 20))
    vmem_bytes = max(vmem_bytes, 32 << 20)

    out = pl.pallas_call(
        functools.partial(munet4_kernel, batch=batch),
        out_shape=jax.ShapeDtypeStruct((bp, OUT_DIM), jnp.float32),
        grid_spec=pltpu.PrefetchScalarGridSpec(
            num_scalar_prefetch=0,
            grid=(4, nt),
            in_specs=[
                # x only matters in phase 0 -> collapse to block 0 elsewhere
                pl.BlockSpec((tb, IN_DIM),
                             lambda p, i: (jnp.where(p == 0, i, 0), 0)),
                # packed weight / vector slabs: VMEM-resident across the grid
                pl.BlockSpec((W_SLAB_ROWS, FEAT), lambda p, i: (0, 0)),
                pl.BlockSpec((V_SLAB_ROWS, FEAT), lambda p, i: (0, 0)),
            ],
            out_specs=pl.BlockSpec((tb, OUT_DIM),
                                   lambda p, i: (jnp.where(p == 3, i, 0), 0)),
            scratch_shapes=[
                pltpu.VMEM((nt, tb, FEAT), jnp.float32),   # per-layer z buffer
                pltpu.VMEM((2, FEAT), jnp.float32),        # [sum; sum-of-squares]
                pltpu.VMEM((2, FEAT), jnp.float32),        # [scale; shift]
            ],
        ),
        compiler_params=pltpu.CompilerParams(
            # BN stats couple all batch tiles -> both axes run sequentially on
            # one core (shared scratch accumulators).
            dimension_semantics=("arbitrary", "arbitrary"),
            vmem_limit_bytes=vmem_bytes,
        ),
    )(x, w_slab, v_slab)
    return out[:batch]


# ---------------------------------------------------------------------------
# Parameter construction (PyTorch-style init) and packing.
# ---------------------------------------------------------------------------
def init_params(key):
    dims = [(24, 64), (64, 16), (16, 8), (8, 4)]
    params = []
    for fan_in, fan_out in dims:
        key, kw, kb = jax.random.split(key, 3)
        bound = 1.0 / jnp.sqrt(jnp.float32(fan_in))
        # stored as [in, out] (transposed relative to PyTorch's [out, in])
        w = jax.random.uniform(kw, (fan_in, fan_out), jnp.float32, -bound, bound)
        b = jax.random.uniform(kb, (1, fan_out), jnp.float32, -bound, bound)
        params.append((w, b))
    bn = [(jnp.ones((1, n), jnp.float32), jnp.zeros((1, n), jnp.float32))
          for n in (64, 16, 8)]
    return params, bn


def pack_params(params, bn):
    """Pack the 15 parameter tensors into a [216,64] weight slab and a [16,64]
    bias/gamma/beta slab (zero-padded), so the kernel sees 3 DMAs, not 15."""
    def pad_w(w, rows):
        slab = jnp.zeros((rows, FEAT), jnp.float32)
        return slab.at[:w.shape[0], :w.shape[1]].set(w)

    def pad_v(v):
        row = jnp.zeros((1, FEAT), jnp.float32)
        return row.at[:, :v.shape[1]].set(v)

    (w1, b1), (w2, b2), (w3, b3), (wmu, bmu) = params
    (g1, be1), (g2, be2), (g3, be3) = bn
    w_slab = jnp.concatenate(
        [pad_w(w1, 24), pad_w(w2, 64), pad_w(w3, 64), pad_w(wmu, 64)], axis=0)
    v_rows = [b1, b2, b3, bmu, g1, g2, g3, be1, be2, be3]
    v_slab = jnp.concatenate(
        [pad_v(v) for v in v_rows]
        + [jnp.zeros((V_SLAB_ROWS - len(v_rows), FEAT), jnp.float32)], axis=0)
    return w_slab, v_slab


# ---------------------------------------------------------------------------
# Pure-JAX reference (training-mode BatchNorm semantics).
# ---------------------------------------------------------------------------
def munet4_ref(x, params, bn):
    (w1, b1), (w2, b2), (w3, b3), (wmu, bmu) = params
    (g1, be1), (g2, be2), (g3, be3) = bn
    eps = 1e-5

    def block(h, w, b, g, be):
        z = h @ w + b
        mean = z.mean(0, keepdims=True)
        var = ((z - mean) ** 2).mean(0, keepdims=True)
        return jnp.maximum((z - mean) / jnp.sqrt(var + eps) * g + be, 0.0)

    h = block(x, w1, b1, g1, be1)
    h = block(h, w2, b2, g2, be2)
    h = block(h, w3, b3, g3, be3)
    return jnp.tanh(h @ wmu + bmu)


if __name__ == "__main__":
    key = jax.random.PRNGKey(0)
    key, kx = jax.random.split(key)

    batch = 8                      # small batch; BatchNorm1d needs batch > 1
    x = jax.random.normal(kx, (batch, 24), jnp.float32)

    params, bn = init_params(key)
    w_slab, v_slab = pack_params(params, bn)

    mu = munet4_forward(x, w_slab, v_slab)
    mu = jax.block_until_ready(mu)

    ref = munet4_ref(x, params, bn)
    assert mu.shape == (batch, 4)
    assert jnp.allclose(mu, ref, atol=1e-4, rtol=1e-4)

    # also exercise batch padding + multi-tile stats accumulation (3 tiles of 8)
    key, kx2 = jax.random.split(key)
    x2 = jax.random.normal(kx2, (20, 24), jnp.float32)
    mu2 = jax.block_until_ready(munet4_forward(x2, w_slab, v_slab, block_rows=8))
    ref2 = munet4_ref(x2, params, bn)
    assert mu2.shape == (20, 4)
    assert jnp.allclose(mu2, ref2, atol=1e-4, rtol=1e-4)

    print("KERNEL_OK")
</pallas_src>

<mosaic_0001>
module attributes {stable_mosaic.version = 11 : i64} {
  func.func @munet4_kernel(%arg0: i32, %arg1: i32, %arg2: memref<8x24xf32, #tpu.memory_space<vmem>>, %arg3: memref<216x64xf32, #tpu.memory_space<vmem>>, %arg4: memref<16x64xf32, #tpu.memory_space<vmem>>, %arg5: memref<8x4xf32, #tpu.memory_space<vmem>>, %arg6: memref<1x8x64xf32, #tpu.memory_space<vmem>>, %arg7: memref<2x64xf32, #tpu.memory_space<vmem>>, %arg8: memref<2x64xf32, #tpu.memory_space<vmem>>) attributes {dimension_semantics = [#tpu.dimension_semantics<arbitrary>, #tpu.dimension_semantics<arbitrary>], iteration_bounds = array<i64: 4, 1>, scalar_prefetch = 0 : i64, scratch_operands = 3 : i64, tpu.core_type = #tpu.core_type<tc>, window_params = [{transform_indices = @transform_0, window_bounds = array<i64: 8, 24>}, {pipeline_mode = #tpu.pipeline_mode<synchronous>, transform_indices = @transform_1, window_bounds = array<i64: 216, 64>}, {pipeline_mode = #tpu.pipeline_mode<synchronous>, transform_indices = @transform_2, window_bounds = array<i64: 16, 64>}, {transform_indices = @transform_3, window_bounds = array<i64: 8, 4>}]} {
    %c8_i32 = arith.constant 8 : i32
    %0 = arith.muli %arg1, %c8_i32 : i32
    %1 = tpu.iota {dimensions = array<i32: 0>} : vector<8x1xi32>
    %2 = vector.broadcast %0 : i32 to vector<8x1xi32>
    %3 = arith.addi %2, %1 : vector<8x1xi32>
    %c8_i32_0 = arith.constant 8 : i32
    %4 = vector.broadcast %c8_i32_0 : i32 to vector<8x1xi32>
    %5 = arith.cmpi slt, %3, %4 : vector<8x1xi32>
    %6 = arith.extui %5 : vector<8x1xi1> to vector<8x1xi32>
    %7 = arith.sitofp %6 : vector<8x1xi32> to vector<8x1xf32>
    %c0_i32 = arith.constant 0 : i32
    %8 = arith.cmpi eq, %arg0, %c0_i32 : i32
    %9 = arith.extui %8 : i1 to i32
    %c0_i32_1 = arith.constant 0 : i32
    %10 = arith.cmpi ne, %9, %c0_i32_1 : i32
    scf.if %10 {
      %c0_i32_10 = arith.constant 0 : i32
      %20 = arith.cmpi eq, %arg1, %c0_i32_10 : i32
      %21 = arith.extui %20 : i1 to i32
      %c0_i32_11 = arith.constant 0 : i32
      %22 = arith.cmpi ne, %21, %c0_i32_11 : i32
      scf.if %22 {
        %cst_26 = arith.constant 0.000000e+00 : f32
        %44 = vector.broadcast %cst_26 : f32 to vector<2x64xf32>
        %c0_27 = arith.constant 0 : index
        %c0_28 = arith.constant 0 : index
        %45 = vector.load %arg7[%c0_27, %c0_28] : memref<2x64xf32, #tpu.memory_space<vmem>>, vector<2x64xf32>
        tpu.vector_store %arg7[%c0_27, %c0_28], %44 {strides = array<i32>} : memref<2x64xf32, #tpu.memory_space<vmem>>, vector<2x64xf32>,
      } else {
      }
      %c0 = arith.constant 0 : index
      %c0_12 = arith.constant 0 : index
      %23 = vector.load %arg2[%c0, %c0_12] : memref<8x24xf32, #tpu.memory_space<vmem>>, vector<8x24xf32>
      %c0_13 = arith.constant 0 : index
      %c0_14 = arith.constant 0 : index
      %24 = vector.load %arg4[%c0_13, %c0_14] : memref<16x64xf32, #tpu.memory_space<vmem>>, vector<1x64xf32>
      %c0_15 = arith.constant 0 : index
      %c0_16 = arith.constant 0 : index
      %25 = vector.load %arg3[%c0_15, %c0_16] : memref<216x64xf32, #tpu.memory_space<vmem>>, vector<24x64xf32>
      %cst_17 = arith.constant dense<0.000000e+00> : vector<8x64xf32>
      %26 = tpu.matmul %23, %25, %cst_17 {dimension_numbers = #tpu.dot_dimension_numbers<[1], [0], [0], [1], [0, 0, 1, 1], [], []>} : vector<8x24xf32>, vector<24x64xf32>, vector<8x64xf32> -> vector<8x64xf32>
      %27 = vector.broadcast %24 : vector<1x64xf32> to vector<8x64xf32>
      %28 = arith.addf %26, %27 : vector<8x64xf32>
      %29 = arith.index_cast %arg1 : i32 to index
      %c0_18 = arith.constant 0 : index
      %c0_19 = arith.constant 0 : index
      %30 = vector.load %arg6[%29, %c0_18, %c0_19] : memref<1x8x64xf32, #tpu.memory_space<vmem>>, vector<1x8x64xf32>
      %31 = vector.shape_cast %30 : vector<1x8x64xf32> to vector<8x64xf32>
      %32 = vector.shape_cast %28 : vector<8x64xf32> to vector<1x8x64xf32>
      tpu.vector_store %arg6[%29, %c0_18, %c0_19], %32 {strides = array<i32>} : memref<1x8x64xf32, #tpu.memory_space<vmem>>, vector<1x8x64xf32>,
      %33 = vector.broadcast %7 : vector<8x1xf32> to vector<8x64xf32>
      %34 = arith.mulf %28, %33 : vector<8x64xf32>
      %cst_20 = arith.constant dense<0.000000e+00> : vector<64xf32>
      %35 = vector.multi_reduction <add>, %34, %cst_20 [0] : vector<8x64xf32> to vector<64xf32>
      %36 = vector.shape_cast %35 : vector<64xf32> to vector<1x64xf32>
      %37 = arith.mulf %34, %28 : vector<8x64xf32>
      %cst_21 = arith.constant dense<0.000000e+00> : vector<64xf32>
      %38 = vector.multi_reduction <add>, %37, %cst_21 [0] : vector<8x64xf32> to vector<64xf32>
      %39 = vector.shape_cast %38 : vector<64xf32> to vector<1x64xf32>
      %c0_22 = arith.constant 0 : index
      %c0_23 = arith.constant 0 : index
      %40 = vector.load %arg7[%c0_22, %c0_23] : memref<2x64xf32, #tpu.memory_space<vmem>>, vector<2x64xf32>
      %41 = tpu.concatenate %36, %39 in 0 : vector<1x64xf32>, vector<1x64xf32> -> vector<2x64xf32>
      %42 = arith.addf %40, %41 : vector<2x64xf32>
      %c0_24 = arith.constant 0 : index
      %c0_25 = arith.constant 0 : index
      %43 = vector.load %arg7[%c0_24, %c0_25] : memref<2x64xf32, #tpu.memory_space<vmem>>, vector<2x64xf32>
      tpu.vector_store %arg7[%c0_24, %c0_25], %42 {strides = array<i32>} : memref<2x64xf32, #tpu.memory_space<vmem>>, vector<2x64xf32>,
    } else {
    }
    %c1_i32 = arith.constant 1 : i32
    %11 = arith.cmpi eq, %arg0, %c1_i32 : i32
    %12 = arith.extui %11 : i1 to i32
    %cst = arith.constant 1.250000e-01 : f32
    %cst_2 = arith.constant 9.99999974E-6 : f32
    %c0_i32_3 = arith.constant 0 : i32
    %13 = arith.cmpi ne, %12, %c0_i32_3 : i32
    scf.if %13 {
      %c0_i32_10 = arith.constant 0 : i32
      %20 = arith.cmpi eq, %arg1, %c0_i32_10 : i32
      %21 = arith.extui %20 : i1 to i32
      %c0_i32_11 = arith.constant 0 : i32
      %22 = arith.cmpi ne, %21, %c0_i32_11 : i32
      scf.if %22 {
        %c4 = arith.constant 4 : index
        %c0_29 = arith.constant 0 : index
        %54 = vector.load %arg4[%c4, %c0_29] : memref<16x64xf32, #tpu.memory_space<vmem>>, vector<1x64xf32>
        %c7 = arith.constant 7 : index
        %c0_30 = arith.constant 0 : index
        %55 = vector.load %arg4[%c7, %c0_30] : memref<16x64xf32, #tpu.memory_space<vmem>>, vector<1x64xf32>
        %c0_31 = arith.constant 0 : index
        %c0_32 = arith.constant 0 : index
        %56 = vector.load %arg7[%c0_31, %c0_32] : memref<2x64xf32, #tpu.memory_space<vmem>>, vector<1x64xf32>
        %57 = vector.broadcast %cst : f32 to vector<1x64xf32>
        %58 = arith.mulf %56, %57 : vector<1x64xf32>
        %c1_33 = arith.constant 1 : index
        %c0_34 = arith.constant 0 : index
        %59 = vector.load %arg7[%c1_33, %c0_34] : memref<2x64xf32, #tpu.memory_space<vmem>>, vector<1x64xf32>
        %60 = vector.broadcast %cst : f32 to vector<1x64xf32>
        %61 = arith.mulf %59, %60 : vector<1x64xf32>
        %62 = arith.mulf %58, %58 : vector<1x64xf32>
        %63 = arith.subf %61, %62 : vector<1x64xf32>
        %cst_35 = arith.constant 0.000000e+00 : f32
        %64 = vector.broadcast %cst_35 : f32 to vector<1x64xf32>
        %65 = arith.maximumf %63, %64 : vector<1x64xf32>
        %66 = vector.broadcast %cst_2 : f32 to vector<1x64xf32>
        %67 = arith.addf %65, %66 : vector<1x64xf32>
        %68 = math.rsqrt %67 : vector<1x64xf32>
        %69 = arith.mulf %54, %68 : vector<1x64xf32>
        %70 = arith.mulf %58, %69 : vector<1x64xf32>
        %71 = arith.subf %55, %70 : vector<1x64xf32>
        %72 = tpu.concatenate %69, %71 in 0 : vector<1x64xf32>, vector<1x64xf32> -> vector<2x64xf32>
        %c0_36 = arith.constant 0 : index
        %c0_37 = arith.constant 0 : index
        %73 = vector.load %arg8[%c0_36, %c0_37] : memref<2x64xf32, #tpu.memory_space<vmem>>, vector<2x64xf32>
        tpu.vector_store %arg8[%c0_36, %c0_37], %72 {strides = array<i32>} : memref<2x64xf32, #tpu.memory_space<vmem>>, vector<2x64xf32>,
        %cst_38 = arith.constant 0.000000e+00 : f32
        %74 = vector.broadcast %cst_38 : f32 to vector<2x64xf32>
        %c0_39 = arith.constant 0 : index
        %c0_40 = arith.constant 0 : index
        %75 = vector.load %arg7[%c0_39, %c0_40] : memref<2x64xf32, #tpu.memory_space<vmem>>, vector<2x64xf32>
        tpu.vector_store %arg7[%c0_39, %c0_40], %74 {strides = array<i32>} : memref<2x64xf32, #tpu.memory_space<vmem>>, vector<2x64xf32>,
      } else {
      }
      %23 = arith.index_cast %arg1 : i32 to index
      %c0 = arith.constant 0 : index
      %c0_12 = arith.constant 0 : index
      %24 = vector.load %arg6[%23, %c0, %c0_12] : memref<1x8x64xf32, #tpu.memory_space<vmem>>, vector<1x8x64xf32>
      %25 = vector.shape_cast %24 : vector<1x8x64xf32> to vector<8x64xf32>
      %c0_13 = arith.constant 0 : index
      %c0_14 = arith.constant 0 : index
      %26 = vector.load %arg8[%c0_13, %c0_14] : memref<2x64xf32, #tpu.memory_space<vmem>>, vector<1x64xf32>
      %27 = vector.broadcast %26 : vector<1x64xf32> to vector<8x64xf32>
      %28 = arith.mulf %25, %27 : vector<8x64xf32>
      %c1 = arith.constant 1 : index
      %c0_15 = arith.constant 0 : index
      %29 = vector.load %arg8[%c1, %c0_15] : memref<2x64xf32, #tpu.memory_space<vmem>>, vector<1x64xf32>
      %30 = vector.broadcast %29 : vector<1x64xf32> to vector<8x64xf32>
      %31 = arith.addf %28, %30 : vector<8x64xf32>
      %cst_16 = arith.constant 0.000000e+00 : f32
      %32 = vector.broadcast %cst_16 : f32 to vector<8x64xf32>
      %33 = arith.maximumf %31, %32 : vector<8x64xf32>
      %c1_17 = arith.constant 1 : index
      %c0_18 = arith.constant 0 : index
      %34 = vector.load %arg4[%c1_17, %c0_18] : memref<16x64xf32, #tpu.memory_space<vmem>>, vector<1x64xf32>
      %c24 = arith.constant 24 : index
      %c0_19 = arith.constant 0 : index
      %35 = vector.load %arg3[%c24, %c0_19] : memref<216x64xf32, #tpu.memory_space<vmem>>, vector<64x64xf32>
      %cst_20 = arith.constant dense<0.000000e+00> : vector<8x64xf32>
      %36 = tpu.matmul %33, %35, %cst_20 {dimension_numbers = #tpu.dot_dimension_numbers<[1], [0], [0], [1], [0, 0, 1, 1], [], []>} : vector<8x64xf32>, vector<64x64xf32>, vector<8x64xf32> -> vector<8x64xf32>
      %37 = vector.broadcast %34 : vector<1x64xf32> to vector<8x64xf32>
      %38 = arith.addf %36, %37 : vector<8x64xf32>
      %39 = arith.index_cast %arg1 : i32 to index
      %c0_21 = arith.constant 0 : index
      %c0_22 = arith.constant 0 : index
      %40 = vector.load %arg6[%39, %c0_21, %c0_22] : memref<1x8x64xf32, #tpu.memory_space<vmem>>, vector<1x8x64xf32>
      %41 = vector.shape_cast %40 : vector<1x8x64xf32> to vector<8x64xf32>
      %42 = vector.shape_cast %38 : vector<8x64xf32> to vector<1x8x64xf32>
      tpu.vector_store %arg6[%39, %c0_21, %c0_22], %42 {strides = array<i32>} : memref<1x8x64xf32, #tpu.memory_space<vmem>>, vector<1x8x64xf32>,
      %43 = vector.broadcast %7 : vector<8x1xf32> to vector<8x64xf32>
      %44 = arith.mulf %38, %43 : vector<8x64xf32>
      %cst_23 = arith.constant dense<0.000000e+00> : vector<64xf32>
      %45 = vector.multi_reduction <add>, %44, %cst_23 [0] : vector<8x64xf32> to vector<64xf32>
      %46 = vector.shape_cast %45 : vector<64xf32> to vector<1x64xf32>
      %47 = arith.mulf %44, %38 : vector<8x64xf32>
      %cst_24 = arith.constant dense<0.000000e+00> : vector<64xf32>
      %48 = vector.multi_reduction <add>, %47, %cst_24 [0] : vector<8x64xf32> to vector<64xf32>
      %49 = vector.shape_cast %48 : vector<64xf32> to vector<1x64xf32>
      %c0_25 = arith.constant 0 : index
      %c0_26 = arith.constant 0 : index
      %50 = vector.load %arg7[%c0_25, %c0_26] : memref<2x64xf32, #tpu.memory_space<vmem>>, vector<2x64xf32>
      %51 = tpu.concatenate %46, %49 in 0 : vector<1x64xf32>, vector<1x64xf32> -> vector<2x64xf32>
      %52 = arith.addf %50, %51 : vector<2x64xf32>
      %c0_27 = arith.constant 0 : index
      %c0_28 = arith.constant 0 : index
      %53 = vector.load %arg7[%c0_27, %c0_28] : memref<2x64xf32, #tpu.memory_space<vmem>>, vector<2x64xf32>
      tpu.vector_store %arg7[%c0_27, %c0_28], %52 {strides = array<i32>} : memref<2x64xf32, #tpu.memory_space<vmem>>, vector<2x64xf32>,
    } else {
    }
    %c2_i32 = arith.constant 2 : i32
    %14 = arith.cmpi eq, %arg0, %c2_i32 : i32
    %15 = arith.extui %14 : i1 to i32
    %cst_4 = arith.constant 1.250000e-01 : f32
    %cst_5 = arith.constant 9.99999974E-6 : f32
    %c0_i32_6 = arith.constant 0 : i32
    %16 = arith.cmpi ne, %15, %c0_i32_6 : i32
    scf.if %16 {
      %c0_i32_10 = arith.constant 0 : i32
      %20 = arith.cmpi eq, %arg1, %c0_i32_10 : i32
      %21 = arith.extui %20 : i1 to i32
      %c0_i32_11 = arith.constant 0 : i32
      %22 = arith.cmpi ne, %21, %c0_i32_11 : i32
      scf.if %22 {
        %c5 = arith.constant 5 : index
        %c0_28 = arith.constant 0 : index
        %54 = vector.load %arg4[%c5, %c0_28] : memref<16x64xf32, #tpu.memory_space<vmem>>, vector<1x64xf32>
        %c8 = arith.constant 8 : index
        %c0_29 = arith.constant 0 : index
        %55 = vector.load %arg4[%c8, %c0_29] : memref<16x64xf32, #tpu.memory_space<vmem>>, vector<1x64xf32>
        %c0_30 = arith.constant 0 : index
        %c0_31 = arith.constant 0 : index
        %56 = vector.load %arg7[%c0_30, %c0_31] : memref<2x64xf32, #tpu.memory_space<vmem>>, vector<1x64xf32>
        %57 = vector.broadcast %cst_4 : f32 to vector<1x64xf32>
        %58 = arith.mulf %56, %57 : vector<1x64xf32>
        %c1_32 = arith.constant 1 : index
        %c0_33 = arith.constant 0 : index
        %59 = vector.load %arg7[%c1_32, %c0_33] : memref<2x64xf32, #tpu.memory_space<vmem>>, vector<1x64xf32>
        %60 = vector.broadcast %cst_4 : f32 to vector<1x64xf32>
        %61 = arith.mulf %59, %60 : vector<1x64xf32>
        %62 = arith.mulf %58, %58 : vector<1x64xf32>
        %63 = arith.subf %61, %62 : vector<1x64xf32>
        %cst_34 = arith.constant 0.000000e+00 : f32
        %64 = vector.broadcast %cst_34 : f32 to vector<1x64xf32>
        %65 = arith.maximumf %63, %64 : vector<1x64xf32>
        %66 = vector.broadcast %cst_5 : f32 to vector<1x64xf32>
        %67 = arith.addf %65, %66 : vector<1x64xf32>
        %68 = math.rsqrt %67 : vector<1x64xf32>
        %69 = arith.mulf %54, %68 : vector<1x64xf32>
        %70 = arith.mulf %58, %69 : vector<1x64xf32>
        %71 = arith.subf %55, %70 : vector<1x64xf32>
        %72 = tpu.concatenate %69, %71 in 0 : vector<1x64xf32>, vector<1x64xf32> -> vector<2x64xf32>
        %c0_35 = arith.constant 0 : index
        %c0_36 = arith.constant 0 : index
        %73 = vector.load %arg8[%c0_35, %c0_36] : memref<2x64xf32, #tpu.memory_space<vmem>>, vector<2x64xf32>
        tpu.vector_store %arg8[%c0_35, %c0_36], %72 {strides = array<i32>} : memref<2x64xf32, #tpu.memory_space<vmem>>, vector<2x64xf32>,
        %cst_37 = arith.constant 0.000000e+00 : f32
        %74 = vector.broadcast %cst_37 : f32 to vector<2x64xf32>
        %c0_38 = arith.constant 0 : index
        %c0_39 = arith.constant 0 : index
        %75 = vector.load %arg7[%c0_38, %c0_39] : memref<2x64xf32, #tpu.memory_space<vmem>>, vector<2x64xf32>
        tpu.vector_store %arg7[%c0_38, %c0_39], %74 {strides = array<i32>} : memref<2x64xf32, #tpu.memory_space<vmem>>, vector<2x64xf32>,
      } else {
      }
      %23 = arith.index_cast %arg1 : i32 to index
      %c0 = arith.constant 0 : index
      %c0_12 = arith.constant 0 : index
      %24 = vector.load %arg6[%23, %c0, %c0_12] : memref<1x8x64xf32, #tpu.memory_space<vmem>>, vector<1x8x64xf32>
      %25 = vector.shape_cast %24 : vector<1x8x64xf32> to vector<8x64xf32>
      %c0_13 = arith.constant 0 : index
      %c0_14 = arith.constant 0 : index
      %26 = vector.load %arg8[%c0_13, %c0_14] : memref<2x64xf32, #tpu.memory_space<vmem>>, vector<1x64xf32>
      %27 = vector.broadcast %26 : vector<1x64xf32> to vector<8x64xf32>
      %28 = arith.mulf %25, %27 : vector<8x64xf32>
      %c1 = arith.constant 1 : index
      %c0_15 = arith.constant 0 : index
      %29 = vector.load %arg8[%c1, %c0_15] : memref<2x64xf32, #tpu.memory_space<vmem>>, vector<1x64xf32>
      %30 = vector.broadcast %29 : vector<1x64xf32> to vector<8x64xf32>
      %31 = arith.addf %28, %30 : vector<8x64xf32>
      %cst_16 = arith.constant 0.000000e+00 : f32
      %32 = vector.broadcast %cst_16 : f32 to vector<8x64xf32>
      %33 = arith.maximumf %31, %32 : vector<8x64xf32>
      %c2 = arith.constant 2 : index
      %c0_17 = arith.constant 0 : index
      %34 = vector.load %arg4[%c2, %c0_17] : memref<16x64xf32, #tpu.memory_space<vmem>>, vector<1x64xf32>
      %c88 = arith.constant 88 : index
      %c0_18 = arith.constant 0 : index
      %35 = vector.load %arg3[%c88, %c0_18] : memref<216x64xf32, #tpu.memory_space<vmem>>, vector<64x64xf32>
      %cst_19 = arith.constant dense<0.000000e+00> : vector<8x64xf32>
      %36 = tpu.matmul %33, %35, %cst_19 {dimension_numbers = #tpu.dot_dimension_numbers<[1], [0], [0], [1], [0, 0, 1, 1], [], []>} : vector<8x64xf32>, vector<64x64xf32>, vector<8x64xf32> -> vector<8x64xf32>
      %37 = vector.broadcast %34 : vector<1x64xf32> to vector<8x64xf32>
      %38 = arith.addf %36, %37 : vector<8x64xf32>
      %39 = arith.index_cast %arg1 : i32 to index
      %c0_20 = arith.constant 0 : index
      %c0_21 = arith.constant 0 : index
      %40 = vector.load %arg6[%39, %c0_20, %c0_21] : memref<1x8x64xf32, #tpu.memory_space<vmem>>, vector<1x8x64xf32>
      %41 = vector.shape_cast %40 : vector<1x8x64xf32> to vector<8x64xf32>
      %42 = vector.shape_cast %38 : vector<8x64xf32> to vector<1x8x64xf32>
      tpu.vector_store %arg6[%39, %c0_20, %c0_21], %42 {strides = array<i32>} : memref<1x8x64xf32, #tpu.memory_space<vmem>>, vector<1x8x64xf32>,
      %43 = vector.broadcast %7 : vector<8x1xf32> to vector<8x64xf32>
      %44 = arith.mulf %38, %43 : vector<8x64xf32>
      %cst_22 = arith.constant dense<0.000000e+00> : vector<64xf32>
      %45 = vector.multi_reduction <add>, %44, %cst_22 [0] : vector<8x64xf32> to vector<64xf32>
      %46 = vector.shape_cast %45 : vector<64xf32> to vector<1x64xf32>
      %47 = arith.mulf %44, %38 : vector<8x64xf32>
      %cst_23 = arith.constant dense<0.000000e+00> : vector<64xf32>
      %48 = vector.multi_reduction <add>, %47, %cst_23 [0] : vector<8x64xf32> to vector<64xf32>
      %49 = vector.shape_cast %48 : vector<64xf32> to vector<1x64xf32>
      %c0_24 = arith.constant 0 : index
      %c0_25 = arith.constant 0 : index
      %50 = vector.load %arg7[%c0_24, %c0_25] : memref<2x64xf32, #tpu.memory_space<vmem>>, vector<2x64xf32>
      %51 = tpu.concatenate %46, %49 in 0 : vector<1x64xf32>, vector<1x64xf32> -> vector<2x64xf32>
      %52 = arith.addf %50, %51 : vector<2x64xf32>
      %c0_26 = arith.constant 0 : index
      %c0_27 = arith.constant 0 : index
      %53 = vector.load %arg7[%c0_26, %c0_27] : memref<2x64xf32, #tpu.memory_space<vmem>>, vector<2x64xf32>
      tpu.vector_store %arg7[%c0_26, %c0_27], %52 {strides = array<i32>} : memref<2x64xf32, #tpu.memory_space<vmem>>, vector<2x64xf32>,
    } else {
    }
    %c3_i32 = arith.constant 3 : i32
    %17 = arith.cmpi eq, %arg0, %c3_i32 : i32
    %18 = arith.extui %17 : i1 to i32
    %cst_7 = arith.constant 1.250000e-01 : f32
    %cst_8 = arith.constant 9.99999974E-6 : f32
    %c0_i32_9 = arith.constant 0 : i32
    %19 = arith.cmpi ne, %18, %c0_i32_9 : i32
    scf.if %19 {
      %c0_i32_10 = arith.constant 0 : i32
      %20 = arith.cmpi eq, %arg1, %c0_i32_10 : i32
      %21 = arith.extui %20 : i1 to i32
      %c0_i32_11 = arith.constant 0 : i32
      %22 = arith.cmpi ne, %21, %c0_i32_11 : i32
      scf.if %22 {
        %c6 = arith.constant 6 : index
        %c0_22 = arith.constant 0 : index
        %42 = vector.load %arg4[%c6, %c0_22] : memref<16x64xf32, #tpu.memory_space<vmem>>, vector<1x64xf32>
        %c9 = arith.constant 9 : index
        %c0_23 = arith.constant 0 : index
        %43 = vector.load %arg4[%c9, %c0_23] : memref<16x64xf32, #tpu.memory_space<vmem>>, vector<1x64xf32>
        %c0_24 = arith.constant 0 : index
        %c0_25 = arith.constant 0 : index
        %44 = vector.load %arg7[%c0_24, %c0_25] : memref<2x64xf32, #tpu.memory_space<vmem>>, vector<1x64xf32>
        %45 = vector.broadcast %cst_7 : f32 to vector<1x64xf32>
        %46 = arith.mulf %44, %45 : vector<1x64xf32>
        %c1_26 = arith.constant 1 : index
        %c0_27 = arith.constant 0 : index
        %47 = vector.load %arg7[%c1_26, %c0_27] : memref<2x64xf32, #tpu.memory_space<vmem>>, vector<1x64xf32>
        %48 = vector.broadcast %cst_7 : f32 to vector<1x64xf32>
        %49 = arith.mulf %47, %48 : vector<1x64xf32>
        %50 = arith.mulf %46, %46 : vector<1x64xf32>
        %51 = arith.subf %49, %50 : vector<1x64xf32>
        %cst_28 = arith.constant 0.000000e+00 : f32
        %52 = vector.broadcast %cst_28 : f32 to vector<1x64xf32>
        %53 = arith.maximumf %51, %52 : vector<1x64xf32>
        %54 = vector.broadcast %cst_8 : f32 to vector<1x64xf32>
        %55 = arith.addf %53, %54 : vector<1x64xf32>
        %56 = math.rsqrt %55 : vector<1x64xf32>
        %57 = arith.mulf %42, %56 : vector<1x64xf32>
        %58 = arith.mulf %46, %57 : vector<1x64xf32>
        %59 = arith.subf %43, %58 : vector<1x64xf32>
        %60 = tpu.concatenate %57, %59 in 0 : vector<1x64xf32>, vector<1x64xf32> -> vector<2x64xf32>
        %c0_29 = arith.constant 0 : index
        %c0_30 = arith.constant 0 : index
        %61 = vector.load %arg8[%c0_29, %c0_30] : memref<2x64xf32, #tpu.memory_space<vmem>>, vector<2x64xf32>
        tpu.vector_store %arg8[%c0_29, %c0_30], %60 {strides = array<i32>} : memref<2x64xf32, #tpu.memory_space<vmem>>, vector<2x64xf32>,
      } else {
      }
      %23 = arith.index_cast %arg1 : i32 to index
      %c0 = arith.constant 0 : index
      %c0_12 = arith.constant 0 : index
      %24 = vector.load %arg6[%23, %c0, %c0_12] : memref<1x8x64xf32, #tpu.memory_space<vmem>>, vector<1x8x64xf32>
      %25 = vector.shape_cast %24 : vector<1x8x64xf32> to vector<8x64xf32>
      %c0_13 = arith.constant 0 : index
      %c0_14 = arith.constant 0 : index
      %26 = vector.load %arg8[%c0_13, %c0_14] : memref<2x64xf32, #tpu.memory_space<vmem>>, vector<1x64xf32>
      %27 = vector.broadcast %26 : vector<1x64xf32> to vector<8x64xf32>
      %28 = arith.mulf %25, %27 : vector<8x64xf32>
      %c1 = arith.constant 1 : index
      %c0_15 = arith.constant 0 : index
      %29 = vector.load %arg8[%c1, %c0_15] : memref<2x64xf32, #tpu.memory_space<vmem>>, vector<1x64xf32>
      %30 = vector.broadcast %29 : vector<1x64xf32> to vector<8x64xf32>
      %31 = arith.addf %28, %30 : vector<8x64xf32>
      %cst_16 = arith.constant 0.000000e+00 : f32
      %32 = vector.broadcast %cst_16 : f32 to vector<8x64xf32>
      %33 = arith.maximumf %31, %32 : vector<8x64xf32>
      %c3 = arith.constant 3 : index
      %c0_17 = arith.constant 0 : index
      %34 = vector.load %arg4[%c3, %c0_17] : memref<16x64xf32, #tpu.memory_space<vmem>>, vector<1x64xf32>
      %c152 = arith.constant 152 : index
      %c0_18 = arith.constant 0 : index
      %35 = vector.load %arg3[%c152, %c0_18] : memref<216x64xf32, #tpu.memory_space<vmem>>, vector<64x64xf32>
      %cst_19 = arith.constant dense<0.000000e+00> : vector<8x64xf32>
      %36 = tpu.matmul %33, %35, %cst_19 {dimension_numbers = #tpu.dot_dimension_numbers<[1], [0], [0], [1], [0, 0, 1, 1], [], []>} : vector<8x64xf32>, vector<64x64xf32>, vector<8x64xf32> -> vector<8x64xf32>
      %37 = vector.broadcast %34 : vector<1x64xf32> to vector<8x64xf32>
      %38 = arith.addf %36, %37 : vector<8x64xf32>
      %39 = math.tanh %38 : vector<8x64xf32>
      %40 = vector.extract_strided_slice %39 {offsets = [0, 0], sizes = [8, 4], strides = [1, 1]} : vector<8x64xf32> to vector<8x4xf32>
      %c0_20 = arith.constant 0 : index
      %c0_21 = arith.constant 0 : index
      %41 = vector.load %arg5[%c0_20, %c0_21] : memref<8x4xf32, #tpu.memory_space<vmem>>, vector<8x4xf32>
      tpu.vector_store %arg5[%c0_20, %c0_21], %40 {strides = array<i32>} : memref<8x4xf32, #tpu.memory_space<vmem>>, vector<8x4xf32>,
    } else {
    }
    return
  }
  func.func @transform_0(%arg0: i32, %arg1: i32) -> (i32, i32) {
    %c0_i32 = arith.constant 0 : i32
    %0 = arith.cmpi eq, %arg0, %c0_i32 : i32
    %c0_i32_0 = arith.constant 0 : i32
    %1 = arith.select %0, %arg1, %c0_i32_0 : i32
    %c0_i32_1 = arith.constant 0 : i32
    %c0_i32_2 = arith.constant 0 : i32
    return %1, %c0_i32_1 : i32, i32
  }
  func.func @transform_1(%arg0: i32, %arg1: i32) -> (i32, i32) {
    %c0_i32 = arith.constant 0 : i32
    %c0_i32_0 = arith.constant 0 : i32
    %c0_i32_1 = arith.constant 0 : i32
    return %c0_i32, %c0_i32_0 : i32, i32
  }
  func.func @transform_2(%arg0: i32, %arg1: i32) -> (i32, i32) {
    %c0_i32 = arith.constant 0 : i32
    %c0_i32_0 = arith.constant 0 : i32
    %c0_i32_1 = arith.constant 0 : i32
    return %c0_i32, %c0_i32_0 : i32, i32
  }
  func.func @transform_3(%arg0: i32, %arg1: i32) -> (i32, i32) {
    %c3_i32 = arith.constant 3 : i32
    %0 = arith.cmpi eq, %arg0, %c3_i32 : i32
    %c0_i32 = arith.constant 0 : i32
    %1 = arith.select %0, %arg1, %c0_i32 : i32
    %c0_i32_0 = arith.constant 0 : i32
    %c0_i32_1 = arith.constant 0 : i32
    return %1, %c0_i32_0 : i32, i32
  }
}

</mosaic_0001>

<llo_original>
// kernel: munet4_forward.1
$region0: #{munet4_forward.1}
  #allocation0 [shape = 'u32[]', space=smem, size = 0x4, offset = 0x4, fixed_abs, tag = 'smem constant byte address 0x4 - core index']
  #allocation1 [shape = 'u32[72,128]{1,0:T(1,128)}', space=vmem, size = 0x9000, scoped, tag = 'internal scratch']
  #allocation2 [shape = 'f32[1,8,64]{2,1,0:T(8,128)}', space=vmem, size = 0x1000, scoped, tag = 'scratch operand']
  #allocation3 [shape = 'f32[2,64]{1,0:T(2,128)}', space=vmem, size = 0x400, scoped, tag = 'scratch operand']
  #allocation4 [shape = 'f32[2,64]{1,0:T(2,128)}', space=vmem, size = 0x400, scoped, tag = 'scratch operand']
  %s0 = inlined_call_operand.vmem [shape: f32[8,24], index: 0, kind: input, shape index: {}]
  %s1 = inlined_call_operand.vmem [shape: f32[216,64], index: 1, kind: input, shape index: {}]
  %s2 = inlined_call_operand.vmem [shape: f32[16,64], index: 2, kind: input, shape index: {}]
  %s3 = inlined_call_operand.vmem [shape: f32[8,4], index: 3, kind: output, shape index: {}]
  %s4 = sld [smem:[#allocation0]]
  $region77: #{munet4_forward.1} parent=0
    _
  %s6 = ssub.s32 1, %s4
  %s7 = scalar_select 0, %s6, %s4
  loop: start=0, step=1, limit=6
  $region2: #{munet4_forward.1} parent=0 // loop_pre_header
    _
  $region3: #{munet4_forward.1} parent=0 // loop_header
    %s9 = sphi 0, %s13
    %p10 = scmp.ge.s32.totalorder %s9, 6
    %s16 = sphi 0, %s28
    %s17 = sphi 0, %s24
    %s18 = sphi 0, %s16
    %s19 = sphi 0, %s17
    %s20 = sphi 0, %s18
    %s21 = sphi 0, %s19
    %s35 = sphi 0, %s37
    %s38 = sphi 0, %s35
    %s39 = sphi 0, %s38
    %s55 = sphi 0, %s39
    %s59 = sphi 0, %s59
    %s61 = sphi 0, %s59
    %s62 = sphi 0, %s61
    %s76 = sphi 0, %s62
    %s80 = sphi 0, %s80
    %s82 = sphi 0, %s80
    %s83 = sphi 0, %s82
    %s97 = sphi 0, %s83
    %s107 = sphi 0, %s109
    %s110 = sphi 0, %s107
    %s111 = sphi 0, %s110
    %s127 = sphi 0, %s111
  $region4: #{munet4_forward.1} parent=0 // loop_header_branch
    %12 = sbr.rel (%p10) target = $region8
  $region5: #{munet4_forward.1} parent=0 // loop_body
    %s14 = ssub.s32 %s9, 1
    %s15 = ssub.s32 %s9, 2
    %s22 = sadd.s32 1, %s17
    %p23 = scmp.ge.s32.totalorder %s22, 1
    %s24 = scalar_select %p23, 0, %s22
    %s25 = sadd.s32 1, %s16
    %s26 = scalar_select %p23, %s25, %s16
    %p27 = scmp.ge.s32.totalorder %s26, 4
    %s28 = scalar_select %p27, 0, %s26
    %p29 = scmp.eq.s32.totalorder %s16, 0
    %s30 = scalar_select %p29, %s17, 0
    %p31 = scmp.eq.s32.totalorder %s28, 0
    %s32 = scalar_select %p31, %s24, 0
    %s33 = ssub.s32 %s30, %s32
    %p34 = scmp.eq.s32.totalorder %s33, 0
    %s36 = sadd.s32 %s35, 1
    %s37 = scalar_select %p34, %s35, %s36
    %p40 = pneg %p34
    %p41 = scmp.eq.s32.totalorder %s9, 3
    %p42 = por %p40, %p41
    %p43 = scmp.ne.s32.totalorder %s35, %s38
    %p44 = scmp.eq.s32.totalorder %s9, 0
    %p45 = por %p43, %p44
    %p46 = scmp.ne.s32.totalorder %s35, %s38
    %p47 = scmp.eq.s32.totalorder %s14, 3
    %p48 = por %p46, %p47
    %p49 = scmp.ne.s32.totalorder %s38, %s39
    %p50 = scmp.eq.s32.totalorder %s14, 0
    %p51 = por %p49, %p50
    %p52 = scmp.ne.s32.totalorder %s38, %s39
    %p53 = scmp.eq.s32.totalorder %s15, 3
    %p54 = por %p52, %p53
    %p56 = scmp.ne.s32.totalorder %s39, %s55
    %p57 = scmp.eq.s32.totalorder %s15, 0
    %p58 = por %p56, %p57
    %s60 = sadd.s32 %s59, 1
    %p63 = scmp.eq.s32.totalorder %s9, 3
    %p64 = scmp.ne.s32.totalorder %s59, %s61
    %p65 = scmp.eq.s32.totalorder %s9, 0
    %p66 = por %p64, %p65
    %p67 = scmp.ne.s32.totalorder %s59, %s61
    %p68 = scmp.eq.s32.totalorder %s14, 3
    %p69 = por %p67, %p68
    %p70 = scmp.ne.s32.totalorder %s61, %s62
    %p71 = scmp.eq.s32.totalorder %s14, 0
    %p72 = por %p70, %p71
    %p73 = scmp.ne.s32.totalorder %s61, %s62
    %p74 = scmp.eq.s32.totalorder %s15, 3
    %p75 = por %p73, %p74
    %p77 = scmp.ne.s32.totalorder %s62, %s76
    %p78 = scmp.eq.s32.totalorder %s15, 0
    %p79 = por %p77, %p78
    %s81 = sadd.s32 %s80, 1
    %p84 = scmp.eq.s32.totalorder %s9, 3
    %p85 = scmp.ne.s32.totalorder %s80, %s82
    %p86 = scmp.eq.s32.totalorder %s9, 0
    %p87 = por %p85, %p86
    %p88 = scmp.ne.s32.totalorder %s80, %s82
    %p89 = scmp.eq.s32.totalorder %s14, 3
    %p90 = por %p88, %p89
    %p91 = scmp.ne.s32.totalorder %s82, %s83
    %p92 = scmp.eq.s32.totalorder %s14, 0
    %p93 = por %p91, %p92
    %p94 = scmp.ne.s32.totalorder %s82, %s83
    %p95 = scmp.eq.s32.totalorder %s15, 3
    %p96 = por %p94, %p95
    %p98 = scmp.ne.s32.totalorder %s83, %s97
    %p99 = scmp.eq.s32.totalorder %s15, 0
    %p100 = por %p98, %p99
    %p101 = scmp.eq.s32.totalorder %s16, 3
    %s102 = scalar_select %p101, %s17, 0
    %p103 = scmp.eq.s32.totalorder %s28, 3
    %s104 = scalar_select %p103, %s24, 0
    %s105 = ssub.s32 %s102, %s104
    %p106 = scmp.eq.s32.totalorder %s105, 0
    %s108 = sadd.s32 %s107, 1
    %s109 = scalar_select %p106, %s107, %s108
    %p112 = pneg %p106
    %p113 = scmp.eq.s32.totalorder %s9, 3
    %p114 = por %p112, %p113
    %p115 = scmp.ne.s32.totalorder %s107, %s110
    %p116 = scmp.eq.s32.totalorder %s9, 0
    %p117 = por %p115, %p116
    %p118 = scmp.ne.s32.totalorder %s107, %s110
    %p119 = scmp.eq.s32.totalorder %s14, 3
    %p120 = por %p118, %p119
    %p121 = scmp.ne.s32.totalorder %s110, %s111
    %p122 = scmp.eq.s32.totalorder %s14, 0
    %p123 = por %p121, %p122
    %p124 = scmp.ne.s32.totalorder %s110, %s111
    %p125 = scmp.eq.s32.totalorder %s15, 3
    %p126 = por %p124, %p125
    %p128 = scmp.ne.s32.totalorder %s111, %s127
    %p129 = scmp.eq.s32.totalorder %s15, 0
    %p130 = por %p128, %p129
    %p131 = scmp.le.s32.totalorder 1, %s9
    %p132 = scmp.lt.s32.totalorder %s9, 5
    %p133 = pnand %p131, %p132
    %p134 = pneg %p133
    // Predicated region
    $region9: #{munet4_forward.1} parent=5 // pred_check
      _
    $region10: #{munet4_forward.1} parent=5 // pred_check_branch
      %136 = sbr.rel (%p133) target = $region12
    $region11: #{munet4_forward.1} parent=5 // pred_region
      %s137 = ssub.s32 %s9, 1
      // Predicated region
      $region13: #{munet4_forward.1} parent=11 // pred_check
        %p138 = pneg %p72
      $region14: #{munet4_forward.1} parent=11 // pred_check_branch
        %140 = sbr.rel (%p138) target = $region16
      $region15: #{munet4_forward.1} parent=11 // pred_region
        _
      $region16: #{munet4_forward.1} parent=11 // pred_fallthru
        _
      // Predicated region
      $region17: #{munet4_forward.1} parent=11 // pred_check
        %p141 = pneg %p93
      $region18: #{munet4_forward.1} parent=11 // pred_check_branch
        %143 = sbr.rel (%p141) target = $region20
      $region19: #{munet4_forward.1} parent=11 // pred_region
        _
      $region20: #{munet4_forward.1} parent=11 // pred_fallthru
        _
    $region12: #{munet4_forward.1} parent=5 // pred_fallthru
      _
    %p144 = scmp.lt.s32.totalorder %s9, 4
    // Predicated region
    $region21: #{munet4_forward.1} parent=5 // pred_check
      %p145 = pneg %p144
    $region22: #{munet4_forward.1} parent=5 // pred_check_branch
      %147 = sbr.rel (%p145) target = $region24
    $region23: #{munet4_forward.1} parent=5 // pred_region
      // Predicated region
      $region25: #{munet4_forward.1} parent=23 // pred_check
        %p148 = pneg %p45
      $region26: #{munet4_forward.1} parent=23 // pred_check_branch
        %150 = sbr.rel (%p148) target = $region28
      $region27: #{munet4_forward.1} parent=23 // pred_region
        %p151 = scmp.eq.s32.totalorder %s16, 0
        %s152 = scalar_select %p151, %s17, 0
        %p153 = scmp.lt.s32.totalorder %s152, 0
        %s154 = scalar_select %p153, %s152, 0
        %s155 = smul.addr %s154, 8
        %s156 = scalar_lea.vmem %s0, %s155
        %p157 = scmp.eq.s32.totalorder %s16, 0
        %s158 = scalar_select %p157, %s17, 0
      $region28: #{munet4_forward.1} parent=23 // pred_fallthru
        _
    $region24: #{munet4_forward.1} parent=5 // pred_fallthru
      _
    %p159 = scmp.le.s32.totalorder 1, %s9
    %p160 = scmp.lt.s32.totalorder %s9, 5
    %p161 = pnand %p159, %p160
    %p162 = pneg %p161
    // Predicated region
    $region29: #{munet4_forward.1} parent=5 // pred_check
      _
    $region30: #{munet4_forward.1} parent=5 // pred_check_branch
      %164 = sbr.rel (%p161) target = $region32
    $region31: #{munet4_forward.1} parent=5 // pred_region
      %s165 = ssub.s32 %s9, 1
      %p166 = scmp.eq.s32.totalorder %s18, 0
      %s167 = scalar_select %p166, %s19, 0
      %p168 = scmp.lt.s32.totalorder %s167, 0
      %s169 = scalar_select %p168, %s167, 0
      %s170 = smul.addr %s169, 8
      %s171 = scalar_lea.vmem %s0, %s170
      %p172 = pneg %p51
      %p173 = pneg %p48
      %p174 = pneg %p72
      %p175 = pneg %p69
      %p176 = pneg %p93
      %p177 = pneg %p90
      %p178 = pneg %p123
      %p179 = pneg %p120
      %p180 = scmp.eq.s32.totalorder %s18, 3
      %s181 = scalar_select %p180, %s19, 0
      %p182 = scmp.lt.s32.totalorder %s181, 0
      %s183 = scalar_select %p182, %s181, 0
      %s184 = smul.addr %s183, 8
      %s185 = scalar_lea.vmem %s3, %s184
      %p186 = scmp.eq.s32.totalorder %s18, 0
      %s187 = scalar_select %p186, %s19, 0
      %p188 = scmp.lt.s32.totalorder %s187, 0
      %s189 = scalar_select %p188, %s187, 0
      %s190 = smul.addr %s189, 8
      %s191 = scalar_lea.vmem %s0, %s190
      %p192 = scmp.eq.s32.totalorder %s18, 0
      %s193 = scalar_select %p192, %s19, 0
      %p194 = scmp.eq.s32.totalorder %s18, 3
      %s195 = scalar_select %p194, %s19, 0
      %p196 = scmp.lt.s32.totalorder %s195, 0
      %s197 = scalar_select %p196, %s195, 0
      %s198 = smul.addr %s197, 8
      %s199 = scalar_lea.vmem %s3, %s198
      %p200 = scmp.eq.s32.totalorder %s18, 3
      %s201 = scalar_select %p200, %s19, 0
      %s202 = smul.u32 %s19, 8
      %v203 = vlaneseq
      %v204 = vshrl.u32 %v203, 7
      %v205 = vstv %s202
      %v206 = vadd.s32 %v205, %v204
      %vm207 = vcmp.lt.s32.totalorder %v206, 8
      %v208 = vsel %vm207, 1, 0
      %v209 = vcvt.s32.f32 %v208
      %p210 = scmp.eq.s32.totalorder %s18, 0
      // Predicated region
      $region33: #{munet4_forward.1} parent=31 // pred_check
        %p211 = pneg %p210
      $region34: #{munet4_forward.1} parent=31 // pred_check_branch
        %213 = sbr.rel (%p211) target = $region36
      $region35: #{munet4_forward.1} parent=31 // pred_region
        %p214 = scmp.eq.s32.totalorder %s19, 0
        // Predicated region
        $region37: #{munet4_forward.1} parent=35 // pred_check
          %p215 = pneg %p214
        $region38: #{munet4_forward.1} parent=35 // pred_check_branch
          %217 = sbr.rel (%p215) target = $region40
        $region39: #{munet4_forward.1} parent=35 // pred_region
          %vm218 = vcmask 517120
          %219 = vst.msk [vmem:[#allocation3] sm:$0x3] %vm218, 0.0
        $region40: #{munet4_forward.1} parent=35 // pred_fallthru
          _
        %v220 = vld [vmem:[%s191] sm:$0xff]
        %v221 = vld [vmem:[%s2] sm:$0x1]
        %v222 = vld [vmem:[%s1] sm:$0xff]
        %v223 = vld [vmem:[%s1 + $0x8] sm:$0xff]
        %v224 = vld [vmem:[%s1 + $0x10] sm:$0xff]
        %v225 = vperm.slane %v221, 0
        %vm226 = vcmask 195584
        %v228 = vsel %vm226, %v220, 0
        %230 = vmatpush.msra.mxu0 0.0
        %231 = vmatpush.msra.mxu0 0.0
        %232 = vmatpush.msra.mxu0 0.0
        %233 = vmatpush.msra.mxu0 0.0
        %234 = vmatpush.msra.mxu0 0.0
        %235 = vmatpush.msra.mxu0 0.0
        %236 = vmatpush.msra.mxu0 0.0
        %237 = vmatpush.msra.mxu0 0.0
        %238 = vmatpush.msra.mxu0 0.0
        %239 = vmatpush.msra.mxu0 0.0
        %240 = vmatpush.msra.mxu0 0.0
        %241 = vmatpush.msra.mxu0 0.0
        %242 = vmatpush.msra.mxu0 0.0
        %243 = vmatpush.msra.mxu0 %v224
        %244 = vmatpush.msra.mxu0 %v223
        %245 = vmatpush.msra.mxu0 %v222
        %246 = vmatmul.f32.gmra.mxu0 %v228
        %v247 = vpop.f32.mrf.mxu0
        %v248 = vadd.f32 %v225, %v247
        %249 = vdwg.mxu0
        %s250 = scalar_lea.vmem [#allocation2], %s202
        %vm251 = vcmask 523264
        %252 = vst.msk [vmem:[%s250] sm:$0xff] %vm251, %v248
        %v253 = vmul.f32 %v248, %v209
        %v254 = vsel %vm251, %v253, 0.0
        %v255 = vrot.slane %v254, 4
        %v256 = vadd.f32 %v254, %v255
        %v257 = vrot.slane %v256, 2
        %v258 = vadd.f32 %v256, %v257
        %v259 = vrot.slane %v258, 1
        %v260 = vadd.f32 %v258, %v259
        %v261 = vmul.f32 %v253, %v248
        %v262 = vsel %vm251, %v261, 0.0
        %v263 = vrot.slane %v262, 4
        %v264 = vadd.f32 %v262, %v263
        %v265 = vrot.slane %v264, 2
        %v266 = vadd.f32 %v264, %v265
        %v267 = vrot.slane %v266, 1
        %v268 = vadd.f32 %v266, %v267
        %v269 = vld [vmem:[#allocation3] sm:$0x3]
        %vm270 = vcmask 1040384
        %v271 = vsel %vm270, %v260, %v268
        %v272 = vadd.f32 %v269, %v271
        %vm273 = vcmask 517120
        %274 = vst.msk [vmem:[#allocation3] sm:$0x3] %vm273, %v272
      $region36: #{munet4_forward.1} parent=31 // pred_fallthru
        _
      %p275 = scmp.eq.s32.totalorder %s18, 1
      // Predicated region
      $region41: #{munet4_forward.1} parent=31 // pred_check
        %p276 = pneg %p275
      $region42: #{munet4_forward.1} parent=31 // pred_check_branch
        %278 = sbr.rel (%p276) target = $region44
      $region43: #{munet4_forward.1} parent=31 // pred_region
        %p279 = scmp.eq.s32.totalorder %s19, 0
        // Predicated region
        $region45: #{munet4_forward.1} parent=43 // pred_check
          %p280 = pneg %p279
        $region46: #{munet4_forward.1} parent=43 // pred_check_branch
          %282 = sbr.rel (%p280) target = $region48
        $region47: #{munet4_forward.1} parent=43 // pred_region
          %v283 = vld [vmem:[%s2 + $0x4] sm:$0x1]
          %v284 = vld [vmem:[%s2 + $0x7] sm:$0x1]
          %v285 = vld [vmem:[#allocation3] sm:$0x1]
          %v286 = vmul.f32 %v285, 0.125
          %v287 = vld [vmem:[#allocation3 + $0x1] sm:$0x1]
          %v288 = vmul.f32 %v287, 0.125
          %v289 = vmul.f32 %v286, %v286
          %v290 = vsub.f32 %v288, %v289
          %v291 = vmax.f32 %v290, 0.0
          %v292 = vadd.f32 %v291, 1e-05
          %v293 = vrsqrt.pop %v292
          %v294 = vmul.f32 %v293, %v292
          %v295 = vmul.f32 %v294, %v293
          %v296 = vmul.f32 0.5, %v295
          %v297 = vsub.f32 1.5, %v296
          %v298 = vmul.f32 %v293, %v297
          %vm299 = vweird.f32 %v292
          %vm300 = vweird.f32 %v293
          %vm301 = vmor %vm299, %vm300
          %v302 = vsel %vm301, %v293, %v298
          %v303 = vmul.f32 %v283, %v302
          %v304 = vmul.f32 %v286, %v303
          %v305 = vsub.f32 %v284, %v304
          %v307 = vrot.slane %v305, 7
          %vm309 = vcmask 1040384
          %v310 = vsel %vm309, %v303, %v307
          %vm311 = vcmask 517120
          %312 = vst.msk [vmem:[#allocation4] sm:$0x3] %vm311, %v310
          %313 = vst.msk [vmem:[#allocation3] sm:$0x3] %vm311, 0.0
        $region48: #{munet4_forward.1} parent=43 // pred_fallthru
          _
        %s314 = scalar_lea.vmem [#allocation2], %s202
        %v315 = vld [vmem:[%s314] sm:$0xff]
        %v316 = vld [vmem:[#allocation4] sm:$0x1]
        %v317 = vperm.slane %v316, 0
        %v318 = vmul.f32 %v315, %v317
        %v319 = vld [vmem:[#allocation4 + $0x1] sm:$0x1]
        %v320 = vperm.slane %v319, 0
        %v321 = vadd.f32 %v318, %v320
        %v322 = vmax.f32 %v321, 0.0
        %v323 = vld [vmem:[%s2 + $0x1] sm:$0x1]
        %v324 = vld [vmem:[%s1 + $0x18] sm:$0xff]
        %v325 = vld [vmem:[%s1 + $0x20] sm:$0xff]
        %v326 = vld [vmem:[%s1 + $0x28] sm:$0xff]
        %v327 = vld [vmem:[%s1 + $0x30] sm:$0xff]
        %v328 = vld [vmem:[%s1 + $0x38] sm:$0xff]
        %v329 = vld [vmem:[%s1 + $0x40] sm:$0xff]
        %v330 = vld [vmem:[%s1 + $0x48] sm:$0xff]
        %v331 = vld [vmem:[%s1 + $0x50] sm:$0xff]
        %v332 = vperm.slane %v323, 0
        %vm333 = vcmask 523264
        %v335 = vsel %vm333, %v322, 0
        %337 = vmatpush.msra.mxu0 0.0
        %338 = vmatpush.msra.mxu0 0.0
        %339 = vmatpush.msra.mxu0 0.0
        %340 = vmatpush.msra.mxu0 0.0
        %341 = vmatpush.msra.mxu0 0.0
        %342 = vmatpush.msra.mxu0 0.0
        %343 = vmatpush.msra.mxu0 0.0
        %344 = vmatpush.msra.mxu0 0.0
        %345 = vmatpush.msra.mxu0 %v331
        %346 = vmatpush.msra.mxu0 %v330
        %347 = vmatpush.msra.mxu0 %v329
        %348 = vmatpush.msra.mxu0 %v328
        %349 = vmatpush.msra.mxu0 %v327
        %350 = vmatpush.msra.mxu0 %v326
        %351 = vmatpush.msra.mxu0 %v325
        %352 = vmatpush.msra.mxu0 %v324
        %353 = vmatmul.f32.gmra.mxu0 %v335
        %v354 = vpop.f32.mrf.mxu0
        %v355 = vadd.f32 %v332, %v354
        %356 = vdwg.mxu0
        %357 = vst.msk [vmem:[%s314] sm:$0xff] %vm333, %v355
        %v358 = vmul.f32 %v355, %v209
        %v359 = vsel %vm333, %v358, 0.0
        %v360 = vrot.slane %v359, 4
        %v361 = vadd.f32 %v359, %v360
        %v362 = vrot.slane %v361, 2
        %v363 = vadd.f32 %v361, %v362
        %v364 = vrot.slane %v363, 1
        %v365 = vadd.f32 %v363, %v364
        %v366 = vmul.f32 %v358, %v355
        %v367 = vsel %vm333, %v366, 0.0
        %v368 = vrot.slane %v367, 4
        %v369 = vadd.f32 %v367, %v368
        %v370 = vrot.slane %v369, 2
        %v371 = vadd.f32 %v369, %v370
        %v372 = vrot.slane %v371, 1
        %v373 = vadd.f32 %v371, %v372
        %v374 = vld [vmem:[#allocation3] sm:$0x3]
        %vm375 = vcmask 1040384
        %v376 = vsel %vm375, %v365, %v373
        %v377 = vadd.f32 %v374, %v376
        %vm378 = vcmask 517120
        %379 = vst.msk [vmem:[#allocation3] sm:$0x3] %vm378, %v377
      $region44: #{munet4_forward.1} parent=31 // pred_fallthru
        _
      %p380 = scmp.eq.s32.totalorder %s18, 2
      // Predicated region
      $region49: #{munet4_forward.1} parent=31 // pred_check
        %p381 = pneg %p380
      $region50: #{munet4_forward.1} parent=31 // pred_check_branch
        %383 = sbr.rel (%p381) target = $region52
      $region51: #{munet4_forward.1} parent=31 // pred_region
        %p384 = scmp.eq.s32.totalorder %s19, 0
        // Predicated region
        $region53: #{munet4_forward.1} parent=51 // pred_check
          %p385 = pneg %p384
        $region54: #{munet4_forward.1} parent=51 // pred_check_branch
          %387 = sbr.rel (%p385) target = $region56
        $region55: #{munet4_forward.1} parent=51 // pred_region
          %v388 = vld [vmem:[%s2 + $0x5] sm:$0x1]
          %v389 = vld [vmem:[%s2 + $0x8] sm:$0x1]
          %v390 = vld [vmem:[#allocation3] sm:$0x1]
          %v391 = vmul.f32 %v390, 0.125
          %v392 = vld [vmem:[#allocation3 + $0x1] sm:$0x1]
          %v393 = vmul.f32 %v392, 0.125
          %v394 = vmul.f32 %v391, %v391
          %v395 = vsub.f32 %v393, %v394
          %v396 = vmax.f32 %v395, 0.0
          %v397 = vadd.f32 %v396, 1e-05
          %v398 = vrsqrt.pop %v397
          %v399 = vmul.f32 %v398, %v397
          %v400 = vmul.f32 %v399, %v398
          %v401 = vmul.f32 0.5, %v400
          %v402 = vsub.f32 1.5, %v401
          %v403 = vmul.f32 %v398, %v402
          %vm404 = vweird.f32 %v397
          %vm405 = vweird.f32 %v398
          %vm406 = vmor %vm404, %vm405
          %v407 = vsel %vm406, %v398, %v403
          %v408 = vmul.f32 %v388, %v407
          %v409 = vmul.f32 %v391, %v408
          %v410 = vsub.f32 %v389, %v409
          %v412 = vrot.slane %v410, 7
          %vm414 = vcmask 1040384
          %v415 = vsel %vm414, %v408, %v412
          %vm416 = vcmask 517120
          %417 = vst.msk [vmem:[#allocation4] sm:$0x3] %vm416, %v415
          %418 = vst.msk [vmem:[#allocation3] sm:$0x3] %vm416, 0.0
        $region56: #{munet4_forward.1} parent=51 // pred_fallthru
          _
        %s419 = scalar_lea.vmem [#allocation2], %s202
        %v420 = vld [vmem:[%s419] sm:$0xff]
        %v421 = vld [vmem:[#allocation4] sm:$0x1]
        %v422 = vperm.slane %v421, 0
        %v423 = vmul.f32 %v420, %v422
        %v424 = vld [vmem:[#allocation4 + $0x1] sm:$0x1]
        %v425 = vperm.slane %v424, 0
        %v426 = vadd.f32 %v423, %v425
        %v427 = vmax.f32 %v426, 0.0
        %v428 = vld [vmem:[%s2 + $0x2] sm:$0x1]
        %v429 = vld [vmem:[%s1 + $0x58] sm:$0xff]
        %v430 = vld [vmem:[%s1 + $0x60] sm:$0xff]
        %v431 = vld [vmem:[%s1 + $0x68] sm:$0xff]
        %v432 = vld [vmem:[%s1 + $0x70] sm:$0xff]
        %v433 = vld [vmem:[%s1 + $0x78] sm:$0xff]
        %v434 = vld [vmem:[%s1 + $0x80] sm:$0xff]
        %v435 = vld [vmem:[%s1 + $0x88] sm:$0xff]
        %v436 = vld [vmem:[%s1 + $0x90] sm:$0xff]
        %v437 = vperm.slane %v428, 0
        %vm438 = vcmask 523264
        %v440 = vsel %vm438, %v427, 0
        %442 = vmatpush.msra.mxu0 0.0
        %443 = vmatpush.msra.mxu0 0.0
        %444 = vmatpush.msra.mxu0 0.0
        %445 = vmatpush.msra.mxu0 0.0
        %446 = vmatpush.msra.mxu0 0.0
        %447 = vmatpush.msra.mxu0 0.0
        %448 = vmatpush.msra.mxu0 0.0
        %449 = vmatpush.msra.mxu0 0.0
        %450 = vmatpush.msra.mxu0 %v436
        %451 = vmatpush.msra.mxu0 %v435
        %452 = vmatpush.msra.mxu0 %v434
        %453 = vmatpush.msra.mxu0 %v433
        %454 = vmatpush.msra.mxu0 %v432
        %455 = vmatpush.msra.mxu0 %v431
        %456 = vmatpush.msra.mxu0 %v430
        %457 = vmatpush.msra.mxu0 %v429
        %458 = vmatmul.f32.gmra.mxu0 %v440
        %v459 = vpop.f32.mrf.mxu0
        %v460 = vadd.f32 %v437, %v459
        %461 = vdwg.mxu0
        %462 = vst.msk [vmem:[%s419] sm:$0xff] %vm438, %v460
        %v463 = vmul.f32 %v460, %v209
        %v464 = vsel %vm438, %v463, 0.0
        %v465 = vrot.slane %v464, 4
        %v466 = vadd.f32 %v464, %v465
        %v467 = vrot.slane %v466, 2
        %v468 = vadd.f32 %v466, %v467
        %v469 = vrot.slane %v468, 1
        %v470 = vadd.f32 %v468, %v469
        %v471 = vmul.f32 %v463, %v460
        %v472 = vsel %vm438, %v471, 0.0
        %v473 = vrot.slane %v472, 4
        %v474 = vadd.f32 %v472, %v473
        %v475 = vrot.slane %v474, 2
        %v476 = vadd.f32 %v474, %v475
        %v477 = vrot.slane %v476, 1
        %v478 = vadd.f32 %v476, %v477
        %v479 = vld [vmem:[#allocation3] sm:$0x3]
        %vm480 = vcmask 1040384
        %v481 = vsel %vm480, %v470, %v478
        %v482 = vadd.f32 %v479, %v481
        %vm483 = vcmask 517120
        %484 = vst.msk [vmem:[#allocation3] sm:$0x3] %vm483, %v482
      $region52: #{munet4_forward.1} parent=31 // pred_fallthru
        _
      %p485 = scmp.eq.s32.totalorder %s18, 3
      // Predicated region
      $region57: #{munet4_forward.1} parent=31 // pred_check
        %p486 = pneg %p485
      $region58: #{munet4_forward.1} parent=31 // pred_check_branch
        %488 = sbr.rel (%p486) target = $region60
      $region59: #{munet4_forward.1} parent=31 // pred_region
        %p489 = scmp.eq.s32.totalorder %s19, 0
        // Predicated region
        $region61: #{munet4_forward.1} parent=59 // pred_check
          %p490 = pneg %p489
        $region62: #{munet4_forward.1} parent=59 // pred_check_branch
          %492 = sbr.rel (%p490) target = $region64
        $region63: #{munet4_forward.1} parent=59 // pred_region
          %v493 = vld [vmem:[%s2 + $0x6] sm:$0x1]
          %v494 = vld [vmem:[%s2 + $0x9] sm:$0x1]
          %v495 = vld [vmem:[#allocation3] sm:$0x1]
          %v496 = vmul.f32 %v495, 0.125
          %v497 = vld [vmem:[#allocation3 + $0x1] sm:$0x1]
          %v498 = vmul.f32 %v497, 0.125
          %v499 = vmul.f32 %v496, %v496
          %v500 = vsub.f32 %v498, %v499
          %v501 = vmax.f32 %v500, 0.0
          %v502 = vadd.f32 %v501, 1e-05
          %v503 = vrsqrt.pop %v502
          %v504 = vmul.f32 %v503, %v502
          %v505 = vmul.f32 %v504, %v503
          %v506 = vmul.f32 0.5, %v505
          %v507 = vsub.f32 1.5, %v506
          %v508 = vmul.f32 %v503, %v507
          %vm509 = vweird.f32 %v502
          %vm510 = vweird.f32 %v503
          %vm511 = vmor %vm509, %vm510
          %v512 = vsel %vm511, %v503, %v508
          %v513 = vmul.f32 %v493, %v512
          %v514 = vmul.f32 %v496, %v513
          %v515 = vsub.f32 %v494, %v514
          %v517 = vrot.slane %v515, 7
          %vm519 = vcmask 1040384
          %v520 = vsel %vm519, %v513, %v517
          %vm521 = vcmask 517120
          %522 = vst.msk [vmem:[#allocation4] sm:$0x3] %vm521, %v520
        $region64: #{munet4_forward.1} parent=59 // pred_fallthru
          _
        %s523 = scalar_lea.vmem [#allocation2], %s202
        %v524 = vld [vmem:[%s523] sm:$0xff]
        %v525 = vld [vmem:[#allocation4] sm:$0x1]
        %v526 = vperm.slane %v525, 0
        %v527 = vmul.f32 %v524, %v526
        %v528 = vld [vmem:[#allocation4 + $0x1] sm:$0x1]
        %v529 = vperm.slane %v528, 0
        %v530 = vadd.f32 %v527, %v529
        %v531 = vmax.f32 %v530, 0.0
        %v532 = vld [vmem:[%s2 + $0x3] sm:$0x1]
        %v533 = vld [vmem:[%s1 + $0x98] sm:$0xff]
        %v534 = vld [vmem:[%s1 + $0xa0] sm:$0xff]
        %v535 = vld [vmem:[%s1 + $0xa8] sm:$0xff]
        %v536 = vld [vmem:[%s1 + $0xb0] sm:$0xff]
        %v537 = vld [vmem:[%s1 + $0xb8] sm:$0xff]
        %v538 = vld [vmem:[%s1 + $0xc0] sm:$0xff]
        %v539 = vld [vmem:[%s1 + $0xc8] sm:$0xff]
        %v540 = vld [vmem:[%s1 + $0xd0] sm:$0xff]
        %v541 = vperm.slane %v532, 0
        %vm542 = vcmask 523264
        %v544 = vsel %vm542, %v531, 0
        %546 = vmatpush.msra.mxu0 0.0
        %547 = vmatpush.msra.mxu0 0.0
        %548 = vmatpush.msra.mxu0 0.0
        %549 = vmatpush.msra.mxu0 0.0
        %550 = vmatpush.msra.mxu0 0.0
        %551 = vmatpush.msra.mxu0 0.0
        %552 = vmatpush.msra.mxu0 0.0
        %553 = vmatpush.msra.mxu0 0.0
        %554 = vmatpush.msra.mxu0 %v540
        %555 = vmatpush.msra.mxu0 %v539
        %556 = vmatpush.msra.mxu0 %v538
        %557 = vmatpush.msra.mxu0 %v537
        %558 = vmatpush.msra.mxu0 %v536
        %559 = vmatpush.msra.mxu0 %v535
        %560 = vmatpush.msra.mxu0 %v534
        %561 = vmatpush.msra.mxu0 %v533
        %562 = vmatmul.f32.gmra.mxu0 %v544
        %v563 = vpop.f32.mrf.mxu0
        %v564 = vadd.f32 %v541, %v563
        %565 = vdwg.mxu0
        %v566 = vtanh.pop %v564
        %vm567 = vcmask 31744
        %568 = vst.msk [vmem:[%s199] sm:$0xff] %vm567, %v566
      $region60: #{munet4_forward.1} parent=31 // pred_fallthru
        _
      %p569 = scmp.eq.s32.totalorder %s18, 3
      %s570 = scalar_select %p569, %s19, 0
      %p571 = scmp.lt.s32.totalorder %s570, 0
      %s572 = scalar_select %p571, %s570, 0
      %s573 = smul.addr %s572, 8
      %s574 = scalar_lea.vmem %s3, %s573
      // Predicated region
      $region65: #{munet4_forward.1} parent=31 // pred_check
        %p575 = pneg %p120
      $region66: #{munet4_forward.1} parent=31 // pred_check_branch
        %577 = sbr.rel (%p575) target = $region68
      $region67: #{munet4_forward.1} parent=31 // pred_region
        %p578 = scmp.eq.s32.totalorder %s18, 3
        %s579 = scalar_select %p578, %s19, 0
      $region68: #{munet4_forward.1} parent=31 // pred_fallthru
        _
    $region32: #{munet4_forward.1} parent=5 // pred_fallthru
      _
    %p580 = scmp.le.s32.totalorder 2, %s9
    // Predicated region
    $region69: #{munet4_forward.1} parent=5 // pred_check
      %p581 = pneg %p580
    $region70: #{munet4_forward.1} parent=5 // pred_check_branch
      %583 = sbr.rel (%p581) target = $region72
    $region71: #{munet4_forward.1} parent=5 // pred_region
      %s584 = ssub.s32 %s9, 2
      // Predicated region
      $region73: #{munet4_forward.1} parent=71 // pred_check
        %p585 = pneg %p126
      $region74: #{munet4_forward.1} parent=71 // pred_check_branch
        %587 = sbr.rel (%p585) target = $region76
      $region75: #{munet4_forward.1} parent=71 // pred_region
        %p588 = scmp.eq.s32.totalorder %s20, 3
        %s589 = scalar_select %p588, %s21, 0
        %p590 = scmp.lt.s32.totalorder %s589, 0
        %s591 = scalar_select %p590, %s589, 0
        %s592 = smul.addr %s591, 8
        %s593 = scalar_lea.vmem %s3, %s592
      $region76: #{munet4_forward.1} parent=71 // pred_fallthru
        _
    $region72: #{munet4_forward.1} parent=5 // pred_fallthru
      _
  $region6: #{munet4_forward.1} parent=0 // loop_footer
    %s13 = sadd.s32 1, %s9
  $region7: #{munet4_forward.1} parent=0 // loop_footer_branch
    %8 = sbr.rel target = $region3
  $region8: #{munet4_forward.1} parent=0 // loop_exit
    _

</llo_original>
